<compile_context>
chip_gen: v6e
topology: v6e:2x2x1
jax: 0.10.0
libtpu: 0.0.40
codegen_flags: <defaults>
</compile_context>

<pallas_src>
import jax
import jax.numpy as jnp
from jax.experimental import pallas as pl
from jax.experimental.pallas import tpu as pltpu

_LANE = 128          # TPU lane width
_MAX_TILE_B = 8192   # lane-axis batch tile (multiple of 128); f32 input block
                     # = num_agents * 8192 * 4 B (~128 KiB for 4 agents),
                     # comfortably double-buffered on v5e/v6e/v7x.


def _vdn_mixer_kernel(qs_ref, out_ref):
    # qs_ref : [num_agents, TILE_B]  (agents on sublanes, batch lane-dense)
    # out_ref: [1, TILE_B]           (lane-dense output block)
    # num_agents is tiny & static -> sum over axis 0 lowers to elementwise
    # VPU adds; the store is an unmasked, lane-dense vst.
    acc = jnp.sum(qs_ref[...].astype(jnp.float32), axis=0, keepdims=True)
    out_ref[...] = acc.astype(out_ref.dtype)


def vdn_mixer(agent_qs: jax.Array, *, tile_b: int = _MAX_TILE_B) -> jax.Array:
    """Pallas implementation of VDNMixer.forward.

    agent_qs: [batch, num_agents] array.
    returns:  [batch, 1] array of the same dtype
              (== torch.sum(agent_qs, dim=1, keepdim=True)).
    """
    batch, num_agents = agent_qs.shape
    dtype = agent_qs.dtype

    # Put batch on the lane axis; the transpose / pad below are wrapper-side
    # XLA layout plumbing so the kernel itself is fully lane-dense.
    qs_t = jnp.transpose(agent_qs)  # [num_agents, batch]

    # Pad batch up to a lane-aligned tile multiple.
    padded = pl.cdiv(batch, _LANE) * _LANE
    tile_b = max(_LANE, min(tile_b, padded))     # shrink tile for small batch
    padded = pl.cdiv(padded, tile_b) * tile_b    # make padded a tile multiple
    if padded != batch:
        qs_t = jnp.pad(qs_t, ((0, 0), (0, padded - batch)))

    grid = (padded // tile_b,)

    out = pl.pallas_call(
        _vdn_mixer_kernel,
        out_shape=jax.ShapeDtypeStruct((1, padded), dtype),
        grid=grid,
        in_specs=[
            # Block (num_agents, tile_b): leading dim equals the full array
            # dim, trailing dim is a multiple of 128 -> valid TPU tiling.
            pl.BlockSpec((num_agents, tile_b), lambda i: (0, i)),
        ],
        out_specs=pl.BlockSpec((1, tile_b), lambda i: (0, i)),
        compiler_params=pltpu.CompilerParams(
            # Independent batch tiles: shard across TensorCores (v7x megacore).
            dimension_semantics=("parallel",),
        ),
    )(qs_t)

    # [1, padded] -> [batch, 1]
    return out[0, :batch].reshape(batch, 1)


if __name__ == "__main__":
    key = jax.random.PRNGKey(0)
    batch, num_agents = 8, 4  # small shapes consistent with the module
    agent_qs = jax.random.normal(key, (batch, num_agents), dtype=jnp.float32)

    out = vdn_mixer(agent_qs)
    out = jax.block_until_ready(out)

    # Correctness check against torch.sum(dim=1, keepdim=True) semantics.
    ref = jnp.sum(agent_qs, axis=1, keepdims=True)
    assert out.shape == (batch, 1), out.shape
    assert out.dtype == agent_qs.dtype, out.dtype
    assert jnp.allclose(out, ref, atol=1e-6), (out, ref)

    print("KERNEL_OK")
</pallas_src>

<mosaic_0001>
module attributes {stable_mosaic.version = 11 : i64} {
  func.func @_vdn_mixer_kernel(%arg0: i32, %arg1: memref<4x128xf32, #tpu.memory_space<vmem>>, %arg2: memref<1x128xf32, #tpu.memory_space<vmem>>) attributes {dimension_semantics = [#tpu.dimension_semantics<parallel>], iteration_bounds = array<i64: 1>, scalar_prefetch = 0 : i64, scratch_operands = 0 : i64, tpu.core_type = #tpu.core_type<tc>, window_params = [{transform_indices = @transform_0, window_bounds = array<i64: 4, 128>}, {transform_indices = @transform_1, window_bounds = array<i64: 1, 128>}]} {
    %c0 = arith.constant 0 : index
    %c0_0 = arith.constant 0 : index
    %0 = vector.load %arg1[%c0, %c0_0] : memref<4x128xf32, #tpu.memory_space<vmem>>, vector<4x128xf32>
    %cst = arith.constant dense<0.000000e+00> : vector<128xf32>
    %1 = vector.multi_reduction <add>, %0, %cst [0] : vector<4x128xf32> to vector<128xf32>
    %2 = vector.shape_cast %1 : vector<128xf32> to vector<1x128xf32>
    %c0_1 = arith.constant 0 : index
    %c0_2 = arith.constant 0 : index
    %3 = vector.load %arg2[%c0_1, %c0_2] : memref<1x128xf32, #tpu.memory_space<vmem>>, vector<1x128xf32>
    tpu.vector_store %arg2[%c0_1, %c0_2], %2 {strides = array<i32>} : memref<1x128xf32, #tpu.memory_space<vmem>>, vector<1x128xf32>,
    return
  }
  func.func @transform_0(%arg0: i32) -> (i32, i32) {
    %c0_i32 = arith.constant 0 : i32
    %c0_i32_0 = arith.constant 0 : i32
    return %c0_i32, %arg0 : i32, i32
  }
  func.func @transform_1(%arg0: i32) -> (i32, i32) {
    %c0_i32 = arith.constant 0 : i32
    %c0_i32_0 = arith.constant 0 : i32
    return %c0_i32, %arg0 : i32, i32
  }
}

</mosaic_0001>

<llo_original>
// kernel: tpu_custom_call.1
$region0: #{tpu_custom_call.1}
  #allocation0 [shape = 'u32[]', space=smem, size = 0x4, offset = 0x4, fixed_abs, tag = 'smem constant byte address 0x4 - core index']
  #allocation1 [shape = 'u32[144,128]{1,0:T(1,128)}', space=vmem, size = 0x12000, scoped, tag = 'internal scratch']
  %s0 = inlined_call_operand.hbm [shape: f32[4,128], index: 0, kind: input, shape index: {}]
  %s1 = inlined_call_operand.hbm [shape: f32[1,128], index: 1, kind: output, shape index: {}]
  %s2 = sld [smem:[#allocation0]]
  $region18: #{tpu_custom_call.1} parent=0
    _
  %s4 = ssub.s32 1, %s2
  %s5 = scalar_select 0, %s4, %s2
  $region1: #{tpu_custom_call.1} parent=0
    #allocation2 [shape = 'u8[2048]{0}', space=vmem, size = 0x800, scoped, tag = 'input window, operand 0, single buffered']
    #allocation3 [shape = 's32[1]{0}', space=sflag, size = 0x4, scoped, tag = 'scoped memory for tpu_custom_call.1']
    #allocation4 [shape = 's32[1]{0}', space=sflag, size = 0x4, scoped, tag = 'scoped memory for tpu_custom_call.1']
    #allocation5 [shape = 'u8[512]{0}', space=vmem, size = 0x400, scoped, tag = 'output window, operand 0, single buffered']
    %6 = vsyncpa [#allocation3], 0
    %7 = vsyncpa [#allocation4], 0
    // Predicated region
    $region2: #{tpu_custom_call.1} parent=1 // pred_check
      _
    $region3: #{tpu_custom_call.1} parent=1 // pred_check_branch
      %9 = sbr.rel (0) target = $region5
    $region4: #{tpu_custom_call.1} parent=1 // pred_region
      %s11 = ssub.s32 64, 64
      %12 = vsyncadd [#allocation3], %s11
      %s14 = sshll.u32 [#allocation2], 4
      %s15 = int_to_ptr.vmem [resolvable:$true] %s14
      %17 = dma.hbm_to_vmem [thread:$0]  %s0, 64, %s15, [#allocation3]
    $region5: #{tpu_custom_call.1} parent=1 // pred_fallthru
      _
    // Predicated region
    $region6: #{tpu_custom_call.1} parent=1 // pred_check
      _
    $region7: #{tpu_custom_call.1} parent=1 // pred_check_branch
      %19 = sbr.rel (0) target = $region9
    $region8: #{tpu_custom_call.1} parent=1 // pred_region
      %20 = dma.done [#allocation3], 64
    $region9: #{tpu_custom_call.1} parent=1 // pred_fallthru
      _
    %v21 = vld [vmem:[#allocation2] sm:$0xf]
    %vm22 = vcmask 1043456
    %v23 = vsel %vm22, %v21, 0.0
    %v24 = vrot.slane %v23, 4
    %v25 = vadd.f32 %v23, %v24
    %v26 = vrot.slane %v25, 2
    %v27 = vadd.f32 %v25, %v26
    %v28 = vrot.slane %v27, 1
    %v29 = vadd.f32 %v27, %v28
    %30 = vst [vmem:[#allocation5] sm:$0x1] %v29
    // Predicated region
    $region10: #{tpu_custom_call.1} parent=1 // pred_check
      _
    $region11: #{tpu_custom_call.1} parent=1 // pred_check_branch
      %32 = sbr.rel (0) target = $region13
    $region12: #{tpu_custom_call.1} parent=1 // pred_region
      %s34 = ssub.s32 16, 16
      %35 = vsyncadd [#allocation4], %s34
      %s37 = sshll.u32 [#allocation5], 4
      %s38 = int_to_ptr.vmem [resolvable:$true] %s37
      %40 = dma.vmem_to_hbm [thread:$0]  %s38, 16, %s1, [#allocation4]
    $region13: #{tpu_custom_call.1} parent=1 // pred_fallthru
      _
    // Predicated region
    $region14: #{tpu_custom_call.1} parent=1 // pred_check
      _
    $region15: #{tpu_custom_call.1} parent=1 // pred_check_branch
      %42 = sbr.rel (0) target = $region17
    $region16: #{tpu_custom_call.1} parent=1 // pred_region
      %43 = dma.done [#allocation4], 16
    $region17: #{tpu_custom_call.1} parent=1 // pred_fallthru
      _
    %44 = vsyncpa [#allocation3], 1
    %45 = vsyncpa [#allocation4], 1

</llo_original>
